<compile_context>
chip_gen: v7x
topology: tpu7x:2x2x1
jax: 0.10.0
libtpu: 0.0.40
codegen_flags: <defaults>
</compile_context>

<pallas_src>
import functools

import jax
import jax.numpy as jnp
from jax.experimental import pallas as pl
from jax.experimental.pallas import tpu as pltpu


# Static feature flag (perf review: select the single-buffer path statically, no
# runtime try/except around an executed kernel).  pl.Buffered(1) single-buffers
# the grid-constant blocks (LN params; weights when d_ff is untiled), halving
# their VMEM footprint.  buffer_count=1 support varies across jax/libtpu
# releases, so it defaults off; VMEM budgeting below conservatively assumes
# double buffering either way, and Pallas never re-DMAs a block whose index_map
# is constant, so the only cost of leaving it off is VMEM footprint.
_SINGLE_BUFFER_CONSTS = False


def _gelu_tanh(x):
    # Gated act of T5 v1.1 ("gelu_new"): tanh approximation, computed in f32.
    c = jnp.sqrt(2.0 / jnp.pi).astype(x.dtype)
    return 0.5 * x * (1.0 + jnp.tanh(c * (x + 0.044715 * x * x * x)))


def _t5_layer_ff_kernel(x_ref, ln_w_ref, ln_b_ref, wi_ref, wo_ref, o_ref,
                        y_scr, acc_scr, *, eps, t_ff):
    k = pl.program_id(1)
    nk = pl.num_programs(1)

    # ---- first d_ff tile of this row block: LayerNorm + accumulator init ----
    @pl.when(k == 0)
    def _():
        x = x_ref[...].astype(jnp.float32)                          # (tm, D)
        # One-pass stats: var = E[x^2] - mean^2 (biased, like torch LayerNorm).
        mean = jnp.mean(x, axis=-1, keepdims=True)
        mean_sq = jnp.mean(x * x, axis=-1, keepdims=True)
        var = mean_sq - mean * mean
        normed = (x - mean) * jax.lax.rsqrt(var + eps)
        y = normed * ln_w_ref[...].astype(jnp.float32) + ln_b_ref[...].astype(jnp.float32)
        # .type_as(hidden_states): matmul operands stay in the (bf16-capable)
        # matmul dtype; stats above stay in f32.
        y_scr[...] = y.astype(y_scr.dtype)
        acc_scr[...] = jnp.zeros_like(acc_scr)

    y = y_scr[...]                                                  # (tm, D)
    # Fused up-projection: (tm, D) @ (D, 2*t_ff) -> f32, one MXU pass for wi_0|wi_1.
    h = jnp.dot(y, wi_ref[...], preferred_element_type=jnp.float32)
    gate = _gelu_tanh(h[:, :t_ff])
    lin = h[:, t_ff:]
    hidden = (gate * lin).astype(y.dtype)                           # back to matmul dtype
    # TODO(synk): both dropouts of T5LayerFF are identity here (eval/inference mode).
    acc_scr[...] += jnp.dot(hidden, wo_ref[...], preferred_element_type=jnp.float32)

    # ---- last d_ff tile: residual add + store ----
    @pl.when(k == nk - 1)
    def _():
        o_ref[...] = (x_ref[...].astype(jnp.float32) + acc_scr[...]).astype(o_ref.dtype)


# ----------------------------------------------------------------------------
# One-time setup: tile selection + weight repack (do at load time, not per call)
# ----------------------------------------------------------------------------
def _vmem_budget_bytes():
    try:
        cap = int(pltpu.get_tpu_info().vmem_capacity_bytes)
    except Exception:
        cap = 64 * 1024 * 1024            # conservative (v7x-sized per-core VMEM)
    return (cap * 3) // 4                 # headroom for compiler scratch


def _largest_divisor(n, cap, multiple):
    """Largest d <= cap with n % d == 0 and d % multiple == 0, else None."""
    cap = min(cap, n)
    d = (cap // multiple) * multiple
    while d >= multiple:
        if n % d == 0:
            return d
        d -= multiple
    return None


def select_t5_ff_tiles(rows, d_model, d_ff, act_dtype, matmul_dtype=None,
                       *, tm=None, t_ff=None, vmem_budget=None):
    """Chip-aware (tm, t_ff) selection.

    Policy: keep wi/wo fully resident (nk == 1) whenever they fit the per-core
    VMEM budget (128 MiB v5e/v6e parts -> MXU-bound, weights DMA'd once per
    call).  Otherwise (v7x 64 MiB, or very large d_ff) tile d_ff with the
    largest t_ff -- preferring multiples of 256 (MXU K-dim) then 128 (lane
    alignment of the gate/lin split) -- that keeps double-buffered weight tiles
    plus activations under budget, and use a large row tile (512-1024) so the
    re-streamed weight traffic (rows/tm)*3*D*d_ff stays small.
    """
    isz = jnp.dtype(act_dtype).itemsize
    misz = jnp.dtype(matmul_dtype or act_dtype).itemsize
    if vmem_budget is None:
        vmem_budget = _vmem_budget_bytes()

    def act_bytes(tm_):
        # x (2 bufs) + out (2 bufs) + y scratch (matmul dtype) + f32 accumulator.
        return 4 * tm_ * d_model * isz + tm_ * d_model * misz + 4 * tm_ * d_model

    # ---- row tile ----
    if tm is None:
        tm_target = 1024 if vmem_budget >= 80 * 1024 * 1024 else 512
        while tm_target > 8 and act_bytes(min(tm_target, rows)) > vmem_budget // 2:
            tm_target //= 2
        tm = _largest_divisor(rows, tm_target, 8) or rows
    tm = min(tm, rows)
    assert rows % tm == 0, (rows, tm)

    # ---- d_ff tile ----
    if t_ff is None:
        wbuf = 1 if _SINGLE_BUFFER_CONSTS else 2
        if 3 * d_model * d_ff * misz * wbuf + act_bytes(tm) <= vmem_budget:
            t_ff = d_ff                                   # resident weights, nk == 1
        else:
            cap = max((vmem_budget - act_bytes(tm)) // (2 * 3 * d_model * misz), 1)
            t_ff = (_largest_divisor(d_ff, cap, 256)
                    or _largest_divisor(d_ff, cap, 128)
                    or _largest_divisor(d_ff, cap, 8)
                    or _largest_divisor(d_ff, cap, 1)
                    or d_ff)
    assert d_ff % t_ff == 0, (d_ff, t_ff)
    return tm, t_ff


def prepare_t5_ff_weights(wi0, wi1, wo, *, t_ff, matmul_dtype):
    """One-time weight repack (load time, NOT per call):
    wi_0|wi_1 fused per d_ff tile -> (nk, D, 2*t_ff); wo tiled -> (nk, t_ff, D).
    Column block k of wi0/wi1 must line up with row block k of wo (it does)."""
    d_model, d_ff = wi0.shape
    assert d_ff % t_ff == 0, (d_ff, t_ff)
    nk = d_ff // t_ff
    wi_f = jnp.concatenate(
        [wi0.reshape(d_model, nk, t_ff), wi1.reshape(d_model, nk, t_ff)], axis=-1)
    wi_f = jnp.transpose(wi_f, (1, 0, 2)).astype(matmul_dtype)       # (nk, D, 2*t_ff)
    wo_f = wo.reshape(nk, t_ff, d_model).astype(matmul_dtype)        # (nk, t_ff, D)
    return wi_f, wo_f


# ----------------------------------------------------------------------------
# Per-call kernel wrapper (jit-compatible; no repack, no executed fallback)
# ----------------------------------------------------------------------------
def t5_layer_ff(hidden_states, ln_w, ln_b, wi_f, wo_f, *, eps=1e-6, tm, t_ff):
    B, S, D = hidden_states.shape
    rows = B * S
    dtype = hidden_states.dtype
    matmul_dtype = wi_f.dtype
    isz = jnp.dtype(dtype).itemsize
    misz = jnp.dtype(matmul_dtype).itemsize

    nk = wi_f.shape[0]
    d_ff = nk * t_ff
    assert wi_f.shape == (nk, D, 2 * t_ff), wi_f.shape
    assert wo_f.shape == (nk, t_ff, D), wo_f.shape
    assert rows % tm == 0, (rows, tm)

    x2 = hidden_states.reshape(rows, D)
    ln_w2 = ln_w.reshape(1, D)
    ln_b2 = ln_b.reshape(1, D)

    # Advisory cost: when d_ff is tiled, wi/wo are re-streamed once per row tile.
    weight_reads = (rows // tm) if nk > 1 else 1
    cost = pl.CostEstimate(
        flops=6 * rows * D * d_ff,
        transcendentals=rows * d_ff,
        bytes_accessed=(2 * rows * D + 2 * D) * isz
                       + weight_reads * 3 * D * d_ff * misz,
    )

    vmem_limit = _vmem_budget_bytes()

    const_mode = pl.Buffered(1) if _SINGLE_BUFFER_CONSTS else None
    # Weights are constant over the whole grid only when d_ff is untiled.
    # (On 128 MiB parts with nk>1 and spare VMEM, pl.Buffered(3) here can hide
    #  HBM latency jitter; not worth it on v7x's 64 MiB.)
    w_mode = const_mode if nk == 1 else None

    grid_spec = pltpu.PrefetchScalarGridSpec(
        num_scalar_prefetch=0,
        grid=(rows // tm, nk),
        in_specs=[
            pl.BlockSpec((tm, D), lambda i, k: (i, 0)),                       # x rows
            pl.BlockSpec((1, D), lambda i, k: (0, 0),
                         pipeline_mode=const_mode),                           # ln weight
            pl.BlockSpec((1, D), lambda i, k: (0, 0),
                         pipeline_mode=const_mode),                           # ln bias
            pl.BlockSpec((pl.Squeezed(), D, 2 * t_ff), lambda i, k: (k, 0, 0),
                         pipeline_mode=w_mode),                               # wi_0|wi_1
            pl.BlockSpec((pl.Squeezed(), t_ff, D), lambda i, k: (k, 0, 0),
                         pipeline_mode=w_mode),                               # wo
        ],
        out_specs=pl.BlockSpec((tm, D), lambda i, k: (i, 0)),
        scratch_shapes=[
            pltpu.VMEM((tm, D), matmul_dtype),   # LayerNorm output (type_as dtype)
            pltpu.VMEM((tm, D), jnp.float32),    # f32 FFN accumulator
        ],
    )
    # TODO(synk): on v7x (2 TensorCores) shard the d_ff (k) axis across cores and
    # combine the two (tm, D) f32 partials via VMEM_SHARED to halve per-chip
    # weight HBM traffic in the streaming-bound regime.
    out = pl.pallas_call(
        functools.partial(_t5_layer_ff_kernel, eps=eps, t_ff=t_ff),
        out_shape=jax.ShapeDtypeStruct((rows, D), dtype),
        grid_spec=grid_spec,
        compiler_params=pltpu.CompilerParams(
            dimension_semantics=("parallel", "arbitrary"),
            vmem_limit_bytes=vmem_limit,
        ),
        cost_estimate=cost,
    )(x2, ln_w2, ln_b2, wi_f, wo_f)
    return out.reshape(B, S, D)


# ----------------------------------------------------------------------------
# Reference + demo
# ----------------------------------------------------------------------------
def _reference(hidden_states, ln_w, ln_b, wi0, wi1, wo, eps=1e-6):
    x = hidden_states.astype(jnp.float32)
    mean = jnp.mean(x, axis=-1, keepdims=True)
    var = jnp.mean((x - mean) ** 2, axis=-1, keepdims=True)
    y = ((x - mean) * jax.lax.rsqrt(var + eps) * ln_w + ln_b).astype(hidden_states.dtype)
    h = jax.nn.gelu((y @ wi0).astype(jnp.float32), approximate=True) \
        * (y @ wi1).astype(jnp.float32)
    ff = h.astype(hidden_states.dtype) @ wo
    return (x + ff.astype(jnp.float32)).astype(hidden_states.dtype)


if __name__ == "__main__":
    # Small config consistent with the module: batch=2, seq=8, d_model=32, d_ff=64.
    batch, seq, d_model, d_ff = 2, 8, 32, 64
    eps = 1e-6

    key = jax.random.PRNGKey(0)
    kx, kw0, kw1, kwo, kg, kb = jax.random.split(key, 6)

    x = jax.random.normal(kx, (batch, seq, d_model), dtype=jnp.float32)
    ln_w = 1.0 + 0.02 * jax.random.normal(kg, (d_model,), dtype=jnp.float32)
    ln_b = 0.02 * jax.random.normal(kb, (d_model,), dtype=jnp.float32)
    wi0 = 0.05 * jax.random.normal(kw0, (d_model, d_ff), dtype=jnp.float32)
    wi1 = 0.05 * jax.random.normal(kw1, (d_model, d_ff), dtype=jnp.float32)
    wo = 0.05 * jax.random.normal(kwo, (d_ff, d_model), dtype=jnp.float32)

    rows = batch * seq
    # Chip-aware auto selection (picks resident weights for this tiny config);
    # then force t_ff=d_ff//2 so the demo also exercises the d_ff-tiled
    # accumulation path (v7x-style tiling).
    tm, _t_ff_auto = select_t5_ff_tiles(rows, d_model, d_ff, x.dtype)
    t_ff = d_ff // 2

    # One-time weight repack (load time in a real model).
    wi_f, wo_f = prepare_t5_ff_weights(wi0, wi1, wo, t_ff=t_ff, matmul_dtype=x.dtype)

    ff_fn = jax.jit(functools.partial(t5_layer_ff, eps=eps, tm=tm, t_ff=t_ff))
    out = jax.block_until_ready(ff_fn(x, ln_w, ln_b, wi_f, wo_f))

    ref = _reference(x, ln_w, ln_b, wi0, wi1, wo, eps=eps)
    assert out.shape == x.shape and out.dtype == x.dtype
    assert jnp.allclose(out, ref, atol=2e-4, rtol=2e-4), \
        float(jnp.max(jnp.abs(out - ref)))
    print("KERNEL_OK")
</pallas_src>

<mosaic_0001>
module attributes {stable_mosaic.version = 11 : i64} {
  func.func @_t5_layer_ff_kernel(%arg0: i32, %arg1: i32, %arg2: memref<16x32xf32, #tpu.memory_space<vmem>>, %arg3: memref<1x32xf32, #tpu.memory_space<vmem>>, %arg4: memref<1x32xf32, #tpu.memory_space<vmem>>, %arg5: memref<1x32x64xf32, #tpu.memory_space<vmem>>, %arg6: memref<1x32x32xf32, #tpu.memory_space<vmem>>, %arg7: memref<16x32xf32, #tpu.memory_space<vmem>>, %arg8: memref<16x32xf32, #tpu.memory_space<vmem>>, %arg9: memref<16x32xf32, #tpu.memory_space<vmem>>) attributes {dimension_semantics = [#tpu.dimension_semantics<parallel>, #tpu.dimension_semantics<arbitrary>], iteration_bounds = array<i64: 1, 2>, scalar_prefetch = 0 : i64, scratch_operands = 2 : i64, tpu.core_type = #tpu.core_type<tc>, window_params = [{transform_indices = @transform_0, window_bounds = array<i64: 16, 32>}, {pipeline_mode = #tpu.pipeline_mode<synchronous>, transform_indices = @transform_1, window_bounds = array<i64: 1, 32>}, {pipeline_mode = #tpu.pipeline_mode<synchronous>, transform_indices = @transform_2, window_bounds = array<i64: 1, 32>}, {transform_indices = @transform_3, window_bounds = array<i64: 1, 32, 64>}, {transform_indices = @transform_4, window_bounds = array<i64: 1, 32, 32>}, {transform_indices = @transform_5, window_bounds = array<i64: 16, 32>}]} {
    %c0_i32 = arith.constant 0 : i32
    %0 = arith.cmpi eq, %arg1, %c0_i32 : i32
    %1 = arith.extui %0 : i1 to i32
    %c0_i32_0 = arith.constant 0 : i32
    %2 = arith.cmpi ne, %1, %c0_i32_0 : i32
    scf.if %2 {
      %c0_18 = arith.constant 0 : index
      %c0_19 = arith.constant 0 : index
      %33 = vector.load %arg2[%c0_18, %c0_19] : memref<16x32xf32, #tpu.memory_space<vmem>>, vector<16x32xf32>
      %cst_20 = arith.constant dense<0.000000e+00> : vector<16xf32>
      %34 = vector.multi_reduction <add>, %33, %cst_20 [1] : vector<16x32xf32> to vector<16xf32>
      %35 = vector.shape_cast %34 : vector<16xf32> to vector<16x1xf32>
      %cst_21 = arith.constant 3.200000e+01 : f32
      %36 = vector.broadcast %cst_21 : f32 to vector<16x1xf32>
      %37 = arith.divf %35, %36 : vector<16x1xf32>
      %38 = arith.mulf %33, %33 : vector<16x32xf32>
      %cst_22 = arith.constant dense<0.000000e+00> : vector<16xf32>
      %39 = vector.multi_reduction <add>, %38, %cst_22 [1] : vector<16x32xf32> to vector<16xf32>
      %40 = vector.shape_cast %39 : vector<16xf32> to vector<16x1xf32>
      %cst_23 = arith.constant 3.200000e+01 : f32
      %41 = vector.broadcast %cst_23 : f32 to vector<16x1xf32>
      %42 = arith.divf %40, %41 : vector<16x1xf32>
      %43 = arith.mulf %37, %37 : vector<16x1xf32>
      %44 = arith.subf %42, %43 : vector<16x1xf32>
      %45 = vector.broadcast %37 : vector<16x1xf32> to vector<16x32xf32>
      %46 = arith.subf %33, %45 : vector<16x32xf32>
      %cst_24 = arith.constant 9.99999997E-7 : f32
      %47 = vector.broadcast %cst_24 : f32 to vector<16x1xf32>
      %48 = arith.addf %44, %47 : vector<16x1xf32>
      %49 = math.rsqrt %48 : vector<16x1xf32>
      %50 = vector.broadcast %49 : vector<16x1xf32> to vector<16x32xf32>
      %51 = arith.mulf %46, %50 : vector<16x32xf32>
      %c0_25 = arith.constant 0 : index
      %c0_26 = arith.constant 0 : index
      %52 = vector.load %arg3[%c0_25, %c0_26] : memref<1x32xf32, #tpu.memory_space<vmem>>, vector<1x32xf32>
      %53 = vector.broadcast %52 : vector<1x32xf32> to vector<16x32xf32>
      %54 = arith.mulf %51, %53 : vector<16x32xf32>
      %c0_27 = arith.constant 0 : index
      %c0_28 = arith.constant 0 : index
      %55 = vector.load %arg4[%c0_27, %c0_28] : memref<1x32xf32, #tpu.memory_space<vmem>>, vector<1x32xf32>
      %56 = vector.broadcast %55 : vector<1x32xf32> to vector<16x32xf32>
      %57 = arith.addf %54, %56 : vector<16x32xf32>
      %c0_29 = arith.constant 0 : index
      %c0_30 = arith.constant 0 : index
      %58 = vector.load %arg8[%c0_29, %c0_30] : memref<16x32xf32, #tpu.memory_space<vmem>>, vector<16x32xf32>
      tpu.vector_store %arg8[%c0_29, %c0_30], %57 {strides = array<i32>} : memref<16x32xf32, #tpu.memory_space<vmem>>, vector<16x32xf32>,
      %cst_31 = arith.constant 0.000000e+00 : f32
      %59 = vector.broadcast %cst_31 : f32 to vector<16x32xf32>
      %c0_32 = arith.constant 0 : index
      %c0_33 = arith.constant 0 : index
      %60 = vector.load %arg9[%c0_32, %c0_33] : memref<16x32xf32, #tpu.memory_space<vmem>>, vector<16x32xf32>
      tpu.vector_store %arg9[%c0_32, %c0_33], %59 {strides = array<i32>} : memref<16x32xf32, #tpu.memory_space<vmem>>, vector<16x32xf32>,
    } else {
    }
    %c0 = arith.constant 0 : index
    %c0_1 = arith.constant 0 : index
    %3 = vector.load %arg8[%c0, %c0_1] : memref<16x32xf32, #tpu.memory_space<vmem>>, vector<16x32xf32>
    %c0_2 = arith.constant 0 : index
    %c0_3 = arith.constant 0 : index
    %c0_4 = arith.constant 0 : index
    %4 = vector.load %arg5[%c0_2, %c0_3, %c0_4] : memref<1x32x64xf32, #tpu.memory_space<vmem>>, vector<1x32x64xf32>
    %5 = vector.shape_cast %4 : vector<1x32x64xf32> to vector<32x64xf32>
    %cst = arith.constant dense<0.000000e+00> : vector<16x64xf32>
    %6 = tpu.matmul %3, %5, %cst {dimension_numbers = #tpu.dot_dimension_numbers<[1], [0], [0], [1], [0, 0, 1, 1], [], []>} : vector<16x32xf32>, vector<32x64xf32>, vector<16x64xf32> -> vector<16x64xf32>
    %7 = vector.extract_strided_slice %6 {offsets = [0, 0], sizes = [16, 32], strides = [1, 1]} : vector<16x64xf32> to vector<16x32xf32>
    %cst_5 = arith.constant 0.636619746 : f32
    %8 = math.sqrt %cst_5 : f32
    %cst_6 = arith.constant 5.000000e-01 : f32
    %9 = vector.broadcast %cst_6 : f32 to vector<16x32xf32>
    %10 = arith.mulf %9, %7 : vector<16x32xf32>
    %cst_7 = arith.constant 4.471500e-02 : f32
    %11 = vector.broadcast %cst_7 : f32 to vector<16x32xf32>
    %12 = arith.mulf %11, %7 : vector<16x32xf32>
    %13 = arith.mulf %12, %7 : vector<16x32xf32>
    %14 = arith.mulf %13, %7 : vector<16x32xf32>
    %15 = arith.addf %7, %14 : vector<16x32xf32>
    %16 = vector.broadcast %8 : f32 to vector<16x32xf32>
    %17 = arith.mulf %16, %15 : vector<16x32xf32>
    %18 = math.tanh %17 : vector<16x32xf32>
    %cst_8 = arith.constant 1.000000e+00 : f32
    %19 = vector.broadcast %cst_8 : f32 to vector<16x32xf32>
    %20 = arith.addf %19, %18 : vector<16x32xf32>
    %21 = arith.mulf %10, %20 : vector<16x32xf32>
    %22 = vector.extract_strided_slice %6 {offsets = [0, 32], sizes = [16, 32], strides = [1, 1]} : vector<16x64xf32> to vector<16x32xf32>
    %23 = arith.mulf %21, %22 : vector<16x32xf32>
    %c0_9 = arith.constant 0 : index
    %c0_10 = arith.constant 0 : index
    %24 = vector.load %arg9[%c0_9, %c0_10] : memref<16x32xf32, #tpu.memory_space<vmem>>, vector<16x32xf32>
    %c0_11 = arith.constant 0 : index
    %c0_12 = arith.constant 0 : index
    %c0_13 = arith.constant 0 : index
    %25 = vector.load %arg6[%c0_11, %c0_12, %c0_13] : memref<1x32x32xf32, #tpu.memory_space<vmem>>, vector<1x32x32xf32>
    %26 = vector.shape_cast %25 : vector<1x32x32xf32> to vector<32x32xf32>
    %cst_14 = arith.constant dense<0.000000e+00> : vector<16x32xf32>
    %27 = tpu.matmul %23, %26, %cst_14 {dimension_numbers = #tpu.dot_dimension_numbers<[1], [0], [0], [1], [0, 0, 1, 1], [], []>} : vector<16x32xf32>, vector<32x32xf32>, vector<16x32xf32> -> vector<16x32xf32>
    %28 = arith.addf %24, %27 : vector<16x32xf32>
    %c0_15 = arith.constant 0 : index
    %c0_16 = arith.constant 0 : index
    %29 = vector.load %arg9[%c0_15, %c0_16] : memref<16x32xf32, #tpu.memory_space<vmem>>, vector<16x32xf32>
    tpu.vector_store %arg9[%c0_15, %c0_16], %28 {strides = array<i32>} : memref<16x32xf32, #tpu.memory_space<vmem>>, vector<16x32xf32>,
    %c1_i32 = arith.constant 1 : i32
    %30 = arith.cmpi eq, %arg1, %c1_i32 : i32
    %31 = arith.extui %30 : i1 to i32
    %c0_i32_17 = arith.constant 0 : i32
    %32 = arith.cmpi ne, %31, %c0_i32_17 : i32
    scf.if %32 {
      %c0_18 = arith.constant 0 : index
      %c0_19 = arith.constant 0 : index
      %33 = vector.load %arg2[%c0_18, %c0_19] : memref<16x32xf32, #tpu.memory_space<vmem>>, vector<16x32xf32>
      %c0_20 = arith.constant 0 : index
      %c0_21 = arith.constant 0 : index
      %34 = vector.load %arg9[%c0_20, %c0_21] : memref<16x32xf32, #tpu.memory_space<vmem>>, vector<16x32xf32>
      %35 = arith.addf %33, %34 : vector<16x32xf32>
      %c0_22 = arith.constant 0 : index
      %c0_23 = arith.constant 0 : index
      %36 = vector.load %arg7[%c0_22, %c0_23] : memref<16x32xf32, #tpu.memory_space<vmem>>, vector<16x32xf32>
      tpu.vector_store %arg7[%c0_22, %c0_23], %35 {strides = array<i32>} : memref<16x32xf32, #tpu.memory_space<vmem>>, vector<16x32xf32>,
    } else {
    }
    return
  }
  func.func @transform_0(%arg0: i32, %arg1: i32) -> (i32, i32) {
    %c0_i32 = arith.constant 0 : i32
    %c0_i32_0 = arith.constant 0 : i32
    return %arg0, %c0_i32 : i32, i32
  }
  func.func @transform_1(%arg0: i32, %arg1: i32) -> (i32, i32) {
    %c0_i32 = arith.constant 0 : i32
    %c0_i32_0 = arith.constant 0 : i32
    %c0_i32_1 = arith.constant 0 : i32
    return %c0_i32, %c0_i32_0 : i32, i32
  }
  func.func @transform_2(%arg0: i32, %arg1: i32) -> (i32, i32) {
    %c0_i32 = arith.constant 0 : i32
    %c0_i32_0 = arith.constant 0 : i32
    %c0_i32_1 = arith.constant 0 : i32
    return %c0_i32, %c0_i32_0 : i32, i32
  }
  func.func @transform_3(%arg0: i32, %arg1: i32) -> (i32, i32, i32) {
    %c0_i32 = arith.constant 0 : i32
    %c0_i32_0 = arith.constant 0 : i32
    %c0_i32_1 = arith.constant 0 : i32
    return %arg1, %c0_i32, %c0_i32_0 : i32, i32, i32
  }
  func.func @transform_4(%arg0: i32, %arg1: i32) -> (i32, i32, i32) {
    %c0_i32 = arith.constant 0 : i32
    %c0_i32_0 = arith.constant 0 : i32
    %c0_i32_1 = arith.constant 0 : i32
    return %arg1, %c0_i32, %c0_i32_0 : i32, i32, i32
  }
  func.func @transform_5(%arg0: i32, %arg1: i32) -> (i32, i32) {
    %c0_i32 = arith.constant 0 : i32
    %c0_i32_0 = arith.constant 0 : i32
    return %arg0, %c0_i32 : i32, i32
  }
}

</mosaic_0001>

<llo_original>
// kernel: t5_layer_ff.1
$region0: #{t5_layer_ff.1}
  #allocation0 [shape = 'u32[]', space=smem, size = 0x4, offset = 0x4, fixed_abs, tag = 'smem constant byte address 0x4 - core index']
  #allocation1 [shape = 'u32[144,128]{1,0:T(1,128)}', space=vmem, size = 0x12000, scoped, tag = 'internal scratch']
  #allocation2 [shape = 'f32[16,32]{1,0:T(8,128)}', space=vmem, size = 0x2000, scoped, tag = 'scratch operand']
  #allocation3 [shape = 'f32[16,32]{1,0:T(8,128)}', space=vmem, size = 0x2000, scoped, tag = 'scratch operand']
  %s0 = inlined_call_operand.hbm [shape: f32[16,32], index: 0, kind: input, shape index: {}]
  %s1 = inlined_call_operand.vmem [shape: f32[1,32], index: 1, kind: input, shape index: {}]
  %s2 = inlined_call_operand.vmem [shape: f32[1,32], index: 2, kind: input, shape index: {}]
  %s3 = inlined_call_operand.hbm [shape: f32[2,32,64], index: 3, kind: input, shape index: {}]
  %s4 = inlined_call_operand.hbm [shape: f32[2,32,32], index: 4, kind: input, shape index: {}]
  %s5 = inlined_call_operand.hbm [shape: f32[16,32], index: 5, kind: output, shape index: {}]
  %s6 = sld [smem:[#allocation0]]
  $region73: #{t5_layer_ff.1} parent=0
    _
  %s8 = ssub.s32 1, %s6
  %s9 = scalar_select 0, %s8, %s6
  $region1: #{t5_layer_ff.1} parent=0
    #allocation4 [shape = 'u8[8192]{0}', space=vmem, size = 0x2000, scoped, tag = 'input window, operand 0, single buffered']
    #allocation5 [shape = 's32[2]{0}', space=sflag, size = 0x8, scoped, tag = 'scoped memory for t5_layer_ff.1']
    #allocation6 [shape = 's32[2]{0}', space=sflag, size = 0x8, scoped, tag = 'scoped memory for t5_layer_ff.1']
    #allocation7 [shape = 'u8[32768]{0}', space=vmem, size = 0x8000, scoped, tag = 'input window, operand 3']
    #allocation8 [shape = 's32[2]{0}', space=sflag, size = 0x8, scoped, tag = 'scoped memory for t5_layer_ff.1']
    #allocation9 [shape = 'u8[32768]{0}', space=vmem, size = 0x8000, scoped, tag = 'input window, operand 4']
    #allocation10 [shape = 'u8[8192]{0}', space=vmem, size = 0x2000, scoped, tag = 'output window, operand 0, single buffered']
    %10 = vsyncpa [#allocation5], 0
    %11 = vsyncpa [#allocation8], 0
    %s12 = scalar_lea.sflag [#allocation8], 1
    %13 = vsyncpa %s12, 0
    %14 = vsyncpa [#allocation6], 0
    loop: start=0, step=1, limit=4
    $region2: #{t5_layer_ff.1} parent=1 // loop_pre_header
      _
    $region3: #{t5_layer_ff.1} parent=1 // loop_header
      %s16 = sphi 0, %s20
      %p17 = scmp.ge.s32.totalorder %s16, 4
      %s23 = sphi 0, %s35
      %s24 = sphi 0, %s31
      %s25 = sphi 0, %s23
      %s26 = sphi 0, %s24
      %s27 = sphi 0, %s25
      %s28 = sphi 0, %s26
      %s38 = sphi 0, %s40
      %s41 = sphi 0, %s38
      %s42 = sphi 0, %s41
      %s58 = sphi 0, %s42
      %s62 = sphi 0, %s62
      %s64 = sphi 0, %s62
      %s65 = sphi 0, %s64
      %s79 = sphi 0, %s65
      %s83 = sphi 0, %s83
      %s85 = sphi 0, %s83
      %s86 = sphi 0, %s85
      %s100 = sphi 0, %s86
      %s106 = sphi 0, %s108
      %s109 = sphi 0, %s106
      %s110 = sphi 0, %s109
      %s126 = sphi 0, %s110
      %s132 = sphi 0, %s134
      %s135 = sphi 0, %s132
      %s136 = sphi 0, %s135
      %s152 = sphi 0, %s136
      %s158 = sphi 0, %s160
      %s161 = sphi 0, %s158
      %s162 = sphi 0, %s161
      %s178 = sphi 0, %s162
    $region4: #{t5_layer_ff.1} parent=1 // loop_header_branch
      %19 = sbr.rel (%p17) target = $region8
    $region5: #{t5_layer_ff.1} parent=1 // loop_body
      %s21 = ssub.s32 %s16, 1
      %s22 = ssub.s32 %s16, 2
      %s29 = sadd.s32 1, %s24
      %p30 = scmp.ge.s32.totalorder %s29, 2
      %s31 = scalar_select %p30, 0, %s29
      %s32 = sadd.s32 1, %s23
      %s33 = scalar_select %p30, %s32, %s23
      %p34 = scmp.ge.s32.totalorder %s33, 1
      %s35 = scalar_select %p34, 0, %s33
      %s36 = ssub.s32 %s23, %s35
      %p37 = scmp.eq.s32.totalorder %s36, 0
      %s39 = sadd.s32 %s38, 1
      %s40 = scalar_select %p37, %s38, %s39
      %p43 = pneg %p37
      %p44 = scmp.eq.s32.totalorder %s16, 1
      %p45 = por %p43, %p44
      %p46 = scmp.ne.s32.totalorder %s38, %s41
      %p47 = scmp.eq.s32.totalorder %s16, 0
      %p48 = por %p46, %p47
      %p49 = scmp.ne.s32.totalorder %s38, %s41
      %p50 = scmp.eq.s32.totalorder %s21, 1
      %p51 = por %p49, %p50
      %p52 = scmp.ne.s32.totalorder %s41, %s42
      %p53 = scmp.eq.s32.totalorder %s21, 0
      %p54 = por %p52, %p53
      %p55 = scmp.ne.s32.totalorder %s41, %s42
      %p56 = scmp.eq.s32.totalorder %s22, 1
      %p57 = por %p55, %p56
      %p59 = scmp.ne.s32.totalorder %s42, %s58
      %p60 = scmp.eq.s32.totalorder %s22, 0
      %p61 = por %p59, %p60
      %s63 = sadd.s32 %s62, 1
      %p66 = scmp.eq.s32.totalorder %s16, 1
      %p67 = scmp.ne.s32.totalorder %s62, %s64
      %p68 = scmp.eq.s32.totalorder %s16, 0
      %p69 = por %p67, %p68
      %p70 = scmp.ne.s32.totalorder %s62, %s64
      %p71 = scmp.eq.s32.totalorder %s21, 1
      %p72 = por %p70, %p71
      %p73 = scmp.ne.s32.totalorder %s64, %s65
      %p74 = scmp.eq.s32.totalorder %s21, 0
      %p75 = por %p73, %p74
      %p76 = scmp.ne.s32.totalorder %s64, %s65
      %p77 = scmp.eq.s32.totalorder %s22, 1
      %p78 = por %p76, %p77
      %p80 = scmp.ne.s32.totalorder %s65, %s79
      %p81 = scmp.eq.s32.totalorder %s22, 0
      %p82 = por %p80, %p81
      %s84 = sadd.s32 %s83, 1
      %p87 = scmp.eq.s32.totalorder %s16, 1
      %p88 = scmp.ne.s32.totalorder %s83, %s85
      %p89 = scmp.eq.s32.totalorder %s16, 0
      %p90 = por %p88, %p89
      %p91 = scmp.ne.s32.totalorder %s83, %s85
      %p92 = scmp.eq.s32.totalorder %s21, 1
      %p93 = por %p91, %p92
      %p94 = scmp.ne.s32.totalorder %s85, %s86
      %p95 = scmp.eq.s32.totalorder %s21, 0
      %p96 = por %p94, %p95
      %p97 = scmp.ne.s32.totalorder %s85, %s86
      %p98 = scmp.eq.s32.totalorder %s22, 1
      %p99 = por %p97, %p98
      %p101 = scmp.ne.s32.totalorder %s86, %s100
      %p102 = scmp.eq.s32.totalorder %s22, 0
      %p103 = por %p101, %p102
      %s104 = ssub.s32 %s24, %s31
      %p105 = scmp.eq.s32.totalorder %s104, 0
      %s107 = sadd.s32 %s106, 1
      %s108 = scalar_select %p105, %s106, %s107
      %p111 = pneg %p105
      %p112 = scmp.eq.s32.totalorder %s16, 1
      %p113 = por %p111, %p112
      %p114 = scmp.ne.s32.totalorder %s106, %s109
      %p115 = scmp.eq.s32.totalorder %s16, 0
      %p116 = por %p114, %p115
      %p117 = scmp.ne.s32.totalorder %s106, %s109
      %p118 = scmp.eq.s32.totalorder %s21, 1
      %p119 = por %p117, %p118
      %p120 = scmp.ne.s32.totalorder %s109, %s110
      %p121 = scmp.eq.s32.totalorder %s21, 0
      %p122 = por %p120, %p121
      %p123 = scmp.ne.s32.totalorder %s109, %s110
      %p124 = scmp.eq.s32.totalorder %s22, 1
      %p125 = por %p123, %p124
      %p127 = scmp.ne.s32.totalorder %s110, %s126
      %p128 = scmp.eq.s32.totalorder %s22, 0
      %p129 = por %p127, %p128
      %s130 = ssub.s32 %s24, %s31
      %p131 = scmp.eq.s32.totalorder %s130, 0
      %s133 = sadd.s32 %s132, 1
      %s134 = scalar_select %p131, %s132, %s133
      %p137 = pneg %p131
      %p138 = scmp.eq.s32.totalorder %s16, 1
      %p139 = por %p137, %p138
      %p140 = scmp.ne.s32.totalorder %s132, %s135
      %p141 = scmp.eq.s32.totalorder %s16, 0
      %p142 = por %p140, %p141
      %p143 = scmp.ne.s32.totalorder %s132, %s135
      %p144 = scmp.eq.s32.totalorder %s21, 1
      %p145 = por %p143, %p144
      %p146 = scmp.ne.s32.totalorder %s135, %s136
      %p147 = scmp.eq.s32.totalorder %s21, 0
      %p148 = por %p146, %p147
      %p149 = scmp.ne.s32.totalorder %s135, %s136
      %p150 = scmp.eq.s32.totalorder %s22, 1
      %p151 = por %p149, %p150
      %p153 = scmp.ne.s32.totalorder %s136, %s152
      %p154 = scmp.eq.s32.totalorder %s22, 0
      %p155 = por %p153, %p154
      %s156 = ssub.s32 %s23, %s35
      %p157 = scmp.eq.s32.totalorder %s156, 0
      %s159 = sadd.s32 %s158, 1
      %s160 = scalar_select %p157, %s158, %s159
      %p163 = pneg %p157
      %p164 = scmp.eq.s32.totalorder %s16, 1
      %p165 = por %p163, %p164
      %p166 = scmp.ne.s32.totalorder %s158, %s161
      %p167 = scmp.eq.s32.totalorder %s16, 0
      %p168 = por %p166, %p167
      %p169 = scmp.ne.s32.totalorder %s158, %s161
      %p170 = scmp.eq.s32.totalorder %s21, 1
      %p171 = por %p169, %p170
      %p172 = scmp.ne.s32.totalorder %s161, %s162
      %p173 = scmp.eq.s32.totalorder %s21, 0
      %p174 = por %p172, %p173
      %p175 = scmp.ne.s32.totalorder %s161, %s162
      %p176 = scmp.eq.s32.totalorder %s22, 1
      %p177 = por %p175, %p176
      %p179 = scmp.ne.s32.totalorder %s162, %s178
      %p180 = scmp.eq.s32.totalorder %s22, 0
      %p181 = por %p179, %p180
      %p182 = scmp.le.s32.totalorder 1, %s16
      %p183 = scmp.lt.s32.totalorder %s16, 3
      %p184 = pnand %p182, %p183
      %p185 = pneg %p184
      // Predicated region
      $region9: #{t5_layer_ff.1} parent=5 // pred_check
        _
      $region10: #{t5_layer_ff.1} parent=5 // pred_check_branch
        %187 = sbr.rel (%p184) target = $region12
      $region11: #{t5_layer_ff.1} parent=5 // pred_region
        %s188 = ssub.s32 %s16, 1
        // Predicated region
        $region13: #{t5_layer_ff.1} parent=11 // pred_check
          %p189 = pneg %p54
        $region14: #{t5_layer_ff.1} parent=11 // pred_check_branch
          %191 = sbr.rel (%p189) target = $region16
        $region15: #{t5_layer_ff.1} parent=11 // pred_region
          %s192 = smul.u32 2, %s25
          %s194 = ssub.s32 256, 256
          %195 = vsyncadd [#allocation5], %s194
          %s196 = smul.addr %s192, 128
          %s197 = scalar_lea.hbm %s0, %s196
          %s198 = sshll.u32 [#allocation4], 4
          %s199 = int_to_ptr.vmem [resolvable:$true] %s198
          %204 = dma.hbm_to_vmem [thread:$0]  %s197, 256, %s199, [#allocation5], 128, 128, 8
        $region16: #{t5_layer_ff.1} parent=11 // pred_fallthru
          _
        // Predicated region
        $region17: #{t5_layer_ff.1} parent=11 // pred_check
          %p205 = pneg %p75
        $region18: #{t5_layer_ff.1} parent=11 // pred_check_branch
          %207 = sbr.rel (%p205) target = $region20
        $region19: #{t5_layer_ff.1} parent=11 // pred_region
          _
        $region20: #{t5_layer_ff.1} parent=11 // pred_fallthru
          _
        // Predicated region
        $region21: #{t5_layer_ff.1} parent=11 // pred_check
          %p208 = pneg %p96
        $region22: #{t5_layer_ff.1} parent=11 // pred_check_branch
          %210 = sbr.rel (%p208) target = $region24
        $region23: #{t5_layer_ff.1} parent=11 // pred_region
          _
        $region24: #{t5_layer_ff.1} parent=11 // pred_fallthru
          _
      $region12: #{t5_layer_ff.1} parent=5 // pred_fallthru
        _
      %p211 = scmp.lt.s32.totalorder %s16, 2
      // Predicated region
      $region25: #{t5_layer_ff.1} parent=5 // pred_check
        %p212 = pneg %p211
      $region26: #{t5_layer_ff.1} parent=5 // pred_check_branch
        %214 = sbr.rel (%p212) target = $region28
      $region27: #{t5_layer_ff.1} parent=5 // pred_region
        // Predicated region
        $region29: #{t5_layer_ff.1} parent=27 // pred_check
          %p215 = pneg %p116
        $region30: #{t5_layer_ff.1} parent=27 // pred_check_branch
          %217 = sbr.rel (%p215) target = $region32
        $region31: #{t5_layer_ff.1} parent=27 // pred_region
          %s218 = sand.u32 %s16, 1
          %s219 = scalar_lea.sflag [#allocation8], %s218
          %s220 = sand.u32 %s106, 1
          %s221 = smul.addr %s220, 32
          %s222 = scalar_lea.vmem [#allocation7], %s221
          %s224 = ssub.s32 512, 512
          %225 = vsyncadd %s219, %s224
          %s226 = smul.addr %s24, 4
          %s227 = smul.addr %s226, 128
          %s228 = scalar_lea.hbm %s3, %s227
          %s229 = sshll.u32 %s222, 4
          %s230 = int_to_ptr.vmem [resolvable:$true] %s229
          %235 = dma.hbm_to_vmem [thread:$0]  %s228, 512, %s230, %s219, 128, 128, 8
        $region32: #{t5_layer_ff.1} parent=27 // pred_fallthru
          _
        // Predicated region
        $region33: #{t5_layer_ff.1} parent=27 // pred_check
          %p236 = pneg %p142
        $region34: #{t5_layer_ff.1} parent=27 // pred_check_branch
          %238 = sbr.rel (%p236) target = $region36
        $region35: #{t5_layer_ff.1} parent=27 // pred_region
          %s239 = sand.u32 %s16, 1
          %s240 = scalar_lea.sflag [#allocation8], %s239
          %s241 = sand.u32 %s132, 1
          %s242 = smul.addr %s241, 32
          %s243 = scalar_lea.vmem [#allocation9], %s242
          %s245 = ssub.s32 512, 512
          %246 = vsyncadd %s240, %s245
          %s247 = smul.addr %s24, 4
          %s248 = smul.addr %s247, 128
          %s249 = scalar_lea.hbm %s4, %s248
          %s250 = sshll.u32 %s243, 4
          %s251 = int_to_ptr.vmem [resolvable:$true] %s250
          %256 = dma.hbm_to_vmem [thread:$0]  %s249, 512, %s251, %s240, 128, 128, 8
        $region36: #{t5_layer_ff.1} parent=27 // pred_fallthru
          _
      $region28: #{t5_layer_ff.1} parent=5 // pred_fallthru
        _
      %p257 = scmp.le.s32.totalorder 1, %s16
      %p258 = scmp.lt.s32.totalorder %s16, 3
      %p259 = pnand %p257, %p258
      %p260 = pneg %p259
      // Predicated region
      $region37: #{t5_layer_ff.1} parent=5 // pred_check
        _
      $region38: #{t5_layer_ff.1} parent=5 // pred_check_branch
        %262 = sbr.rel (%p259) target = $region40
      $region39: #{t5_layer_ff.1} parent=5 // pred_region
        %s263 = ssub.s32 %s16, 1
        // Predicated region
        $region41: #{t5_layer_ff.1} parent=39 // pred_check
          %p264 = pneg %p54
        $region42: #{t5_layer_ff.1} parent=39 // pred_check_branch
          %266 = sbr.rel (%p264) target = $region44
        $region43: #{t5_layer_ff.1} parent=39 // pred_region
          %267 = dma.done [#allocation5], 256
        $region44: #{t5_layer_ff.1} parent=39 // pred_fallthru
          _
        %s268 = sand.u32 %s21, 1
        %s269 = scalar_lea.sflag [#allocation8], %s268
        %s270 = sand.u32 %s109, 1
        %s271 = smul.addr %s270, 32
        %s272 = scalar_lea.vmem [#allocation7], %s271
        // Predicated region
        $region45: #{t5_layer_ff.1} parent=39 // pred_check
          %p273 = pneg %p122
        $region46: #{t5_layer_ff.1} parent=39 // pred_check_branch
          %275 = sbr.rel (%p273) target = $region48
        $region47: #{t5_layer_ff.1} parent=39 // pred_region
          %276 = dma.done %s269, 512
        $region48: #{t5_layer_ff.1} parent=39 // pred_fallthru
          _
        %s277 = sand.u32 %s21, 1
        %s278 = scalar_lea.sflag [#allocation8], %s277
        %s279 = sand.u32 %s135, 1
        %s280 = smul.addr %s279, 32
        %s281 = scalar_lea.vmem [#allocation9], %s280
        // Predicated region
        $region49: #{t5_layer_ff.1} parent=39 // pred_check
          %p282 = pneg %p148
        $region50: #{t5_layer_ff.1} parent=39 // pred_check_branch
          %284 = sbr.rel (%p282) target = $region52
        $region51: #{t5_layer_ff.1} parent=39 // pred_region
          %285 = dma.done %s278, 512
        $region52: #{t5_layer_ff.1} parent=39 // pred_fallthru
          _
        %p286 = pneg %p54
        %p287 = pneg %p51
        %p288 = pneg %p75
        %p289 = pneg %p72
        %p290 = pneg %p96
        %p291 = pneg %p93
        %s292 = sand.u32 %s21, 1
        %s293 = scalar_lea.sflag [#allocation8], %s292
        %s294 = sand.u32 %s109, 1
        %s295 = smul.addr %s294, 32
        %s296 = scalar_lea.vmem [#allocation7], %s295
        %p297 = pneg %p122
        %p298 = pneg %p119
        %s299 = sand.u32 %s21, 1
        %s300 = scalar_lea.sflag [#allocation8], %s299
        %s301 = sand.u32 %s135, 1
        %s302 = smul.addr %s301, 32
        %s303 = scalar_lea.vmem [#allocation9], %s302
        %p304 = pneg %p148
        %p305 = pneg %p145
        %p306 = pneg %p174
        %p307 = pneg %p171
        %s308 = smul.u32 2, %s25
        %s309 = smul.u32 2, %s25
        %p310 = scmp.eq.s32.totalorder %s26, 0
        // Predicated region
        $region53: #{t5_layer_ff.1} parent=39 // pred_check
          %p311 = pneg %p310
        $region54: #{t5_layer_ff.1} parent=39 // pred_check_branch
          %313 = sbr.rel (%p311) target = $region56
        $region55: #{t5_layer_ff.1} parent=39 // pred_region
          %v314 = vld [vmem:[#allocation4] sm:$0xff]
          %v315 = vld [vmem:[#allocation4 + $0x8] sm:$0xff]
          %vm316 = vcmask 261120
          %v317 = vsel %vm316, %v314, 0.0
          %318 = vadd.xlane.f32.xlu0 %v317
          %v319 = vpop.xlane.xlu0 %318
          %v320 = vsel %vm316, %v315, 0.0
          %321 = vadd.xlane.f32.xlu0 %v320
          %v322 = vpop.xlane.xlu0 %321
          %v323 = vrcp.pop 32.0
          %v324 = vmul.f32 %v319, %v323
          %v325 = vmul.f32 %v322, %v323
          %v326 = vmul.f32 %v314, %v314
          %v327 = vmul.f32 %v315, %v315
          %v328 = vsel %vm316, %v326, 0.0
          %329 = vadd.xlane.f32.xlu0 %v328
          %v330 = vpop.xlane.xlu0 %329
          %v331 = vsel %vm316, %v327, 0.0
          %332 = vadd.xlane.f32.xlu0 %v331
          %v333 = vpop.xlane.xlu0 %332
          %v334 = vmul.f32 %v330, %v323
          %v335 = vmul.f32 %v333, %v323
          %v336 = vmul.f32 %v324, %v324
          %v337 = vmul.f32 %v325, %v325
          %v338 = vsub.f32 %v334, %v336
          %v339 = vsub.f32 %v335, %v337
          %v340 = vsub.f32 %v314, %v324
          %v341 = vsub.f32 %v315, %v325
          %v342 = vadd.f32 %v338, 1e-06
          %v343 = vadd.f32 %v339, 1e-06
          %v344 = vrsqrt.pop %v342
          %v345 = vrsqrt.pop %v343
          %v346 = vmul.f32 %v340, %v344
          %v347 = vmul.f32 %v341, %v345
          %v348 = vld [vmem:[%s1] sm:$0x1]
          %v350 = vlaneseq
          %v351 = vshrl.u32 %v350, 7
          %v352 = vsub.s32 0, %v351
          %v353 = vrot.slane %v348, %v352
          %v355 = vmul.f32 %v346, %v353
          %v356 = vmul.f32 %v347, %v353
          %v357 = vld [vmem:[%s2] sm:$0x1]
          %v359 = vlaneseq
          %v360 = vshrl.u32 %v359, 7
          %v361 = vsub.s32 0, %v360
          %v362 = vrot.slane %v357, %v361
          %v364 = vadd.f32 %v355, %v362
          %v365 = vadd.f32 %v356, %v362
          %366 = vst.msk [vmem:[#allocation2] sm:$0xff] %vm316, %v364
          %367 = vst.msk [vmem:[#allocation2 + $0x8] sm:$0xff] %vm316, %v365
          %368 = vst.msk [vmem:[#allocation3] sm:$0xff] %vm316, 0.0
          %369 = vst.msk [vmem:[#allocation3 + $0x8] sm:$0xff] %vm316, 0.0
        $region56: #{t5_layer_ff.1} parent=39 // pred_fallthru
          _
        %v370 = vld [vmem:[#allocation2] sm:$0xff]
        %v371 = vld [vmem:[#allocation2 + $0x8] sm:$0xff]
        %v372 = vld [vmem:[%s272] sm:$0xff]
        %v373 = vld [vmem:[%s272 + $0x8] sm:$0xff]
        %v374 = vld [vmem:[%s272 + $0x10] sm:$0xff]
        %v375 = vld [vmem:[%s272 + $0x18] sm:$0xff]
        %vm376 = vcmask 261120
        %v378 = vsel %vm376, %v370, 0
        %v381 = vsel %vm376, %v371, 0
        %383 = vmatprep.subr.mxu0 0.0
        %384 = vmatpush1.msra.mxu0 %v372
        %385 = vmatprep.subr.mxu0 0.0
        %386 = vmatpush1.msra.mxu0 %v373
        %387 = vmatprep.subr.mxu0 0.0
        %388 = vmatpush1.msra.mxu0 %v374
        %389 = vmatprep.subr.mxu0 0.0
        %390 = vmatpush1.msra.mxu0 %v375
        %391 = vmatprep.subr.mxu0 0.0
        %392 = vmatpush1.msra.mxu0 0.0
        %393 = vmatprep.subr.mxu0 0.0
        %394 = vmatpush1.msra.mxu0 0.0
        %395 = vmatprep.subr.mxu0 0.0
        %396 = vmatpush1.msra.mxu0 0.0
        %397 = vmatprep.subr.mxu0 0.0
        %398 = vmatpush1.msra.mxu0 0.0
        %399 = vmatprep.subr.mxu0 0.0
        %400 = vmatpush1.msra.mxu0 0.0
        %401 = vmatprep.subr.mxu0 0.0
        %402 = vmatpush1.msra.mxu0 0.0
        %403 = vmatprep.subr.mxu0 0.0
        %404 = vmatpush1.msra.mxu0 0.0
        %405 = vmatprep.subr.mxu0 0.0
        %406 = vmatpush1.msra.mxu0 0.0
        %407 = vmatprep.subr.mxu0 0.0
        %408 = vmatpush1.msra.mxu0 0.0
        %409 = vmatprep.subr.mxu0 0.0
        %410 = vmatpush1.msra.mxu0 0.0
        %411 = vmatprep.subr.mxu0 0.0
        %412 = vmatpush1.msra.mxu0 0.0
        %413 = vmatprep.subr.mxu0 0.0
        %414 = vmatpush1.msra.mxu0 0.0
        %415 = vmatprep.subr.mxu0 0.0
        %416 = vmatpush1.msra.mxu0 0.0
        %417 = vmatprep.subr.mxu0 0.0
        %418 = vmatpush1.msra.mxu0 0.0
        %419 = vmatprep.subr.mxu0 0.0
        %420 = vmatpush1.msra.mxu0 0.0
        %421 = vmatprep.subr.mxu0 0.0
        %422 = vmatpush1.msra.mxu0 0.0
        %423 = vmatprep.subr.mxu0 0.0
        %424 = vmatpush1.msra.mxu0 0.0
        %425 = vmatprep.subr.mxu0 0.0
        %426 = vmatpush1.msra.mxu0 0.0
        %427 = vmatprep.subr.mxu0 0.0
        %428 = vmatpush1.msra.mxu0 0.0
        %429 = vmatprep.subr.mxu0 0.0
        %430 = vmatpush1.msra.mxu0 0.0
        %431 = vmatprep.subr.mxu0 0.0
        %432 = vmatpush1.msra.mxu0 0.0
        %433 = vmatprep.subr.mxu0 0.0
        %434 = vmatpush1.msra.mxu0 0.0
        %435 = vmatprep.subr.mxu0 0.0
        %436 = vmatpush1.msra.mxu0 0.0
        %437 = vmatprep.subr.mxu0 0.0
        %438 = vmatpush1.msra.mxu0 0.0
        %439 = vmatprep.subr.mxu0 0.0
        %440 = vmatpush1.msra.mxu0 0.0
        %441 = vmatprep.subr.mxu0 0.0
        %442 = vmatpush1.msra.mxu0 0.0
        %443 = vmatprep.subr.mxu0 0.0
        %444 = vmatpush1.msra.mxu0 0.0
        %445 = vmatprep.subr.mxu0 0.0
        %446 = vmatpush1.msra.mxu0 0.0
        %447 = vmatprep.mubr.f32.mxu0 0.0
        %448 = vmatmul.mubr.f32.gmra.mrb[0].mxu0 %v378
        %v449 = vpop.f32.mrb[0].mxu0
        %v450 = vadd.f32 0.0, %v449
        %v451 = vpop.f32.mrb[0].mxu0
        %452 = vmatprep.mubr.f32.mxu0 0.0
        %453 = vmatmul.mubr.f32.gmra.mrb[0].mxu0 %v381
        %v454 = vpop.f32.mrb[0].mxu0
        %v455 = vadd.f32 0.0, %v454
        %v456 = vpop.f32.mrb[0].mxu0
        %457 = vdwg.mxu0
        %v458 = vmul.f32 %v450, 0.5
        %v459 = vmul.f32 %v455, 0.5
        %v460 = vmul.f32 %v450, 0.044715
        %v461 = vmul.f32 %v455, 0.044715
        %v462 = vmul.f32 %v460, %v450
        %v463 = vmul.f32 %v461, %v455
        %v464 = vmul.f32 %v462, %v450
        %v465 = vmul.f32 %v463, %v455
        %v466 = vadd.f32 %v450, %v464
        %v467 = vadd.f32 %v455, %v465
        %v468 = vmul.f32 %v466, 0.7978845
        %v469 = vmul.f32 %v467, 0.7978845
        %v470 = vtanh.pop %v468
        %v471 = vtanh.pop %v469
        %v472 = vadd.f32 %v470, 1.0
        %v473 = vadd.f32 %v471, 1.0
        %v474 = vmul.f32 %v458, %v472
        %v475 = vmul.f32 %v459, %v473
        %478 = vrot.lane.b32.xlu0 %v450, 96
        %v479 = vpop.permute.xlu0 %478
        %480 = vrot.lane.b32.xlu0 %v455, 96
        %v481 = vpop.permute.xlu0 %480
        %v484 = vmul.f32 %v474, %v479
        %v485 = vmul.f32 %v475, %v481
        %v486 = vld [vmem:[#allocation3] sm:$0xff]
        %v487 = vld [vmem:[#allocation3 + $0x8] sm:$0xff]
        %v488 = vld [vmem:[%s281] sm:$0xff]
        %v489 = vld [vmem:[%s281 + $0x8] sm:$0xff]
        %v490 = vld [vmem:[%s281 + $0x10] sm:$0xff]
        %v491 = vld [vmem:[%s281 + $0x18] sm:$0xff]
        %v493 = vsel %vm376, %v484, 0
        %v496 = vsel %vm376, %v485, 0
        %498 = vmatprep.subr.mxu0 0.0
        %499 = vmatpush1.msra.mxu0 %v488
        %500 = vmatprep.subr.mxu0 0.0
        %501 = vmatpush1.msra.mxu0 %v489
        %502 = vmatprep.subr.mxu0 0.0
        %503 = vmatpush1.msra.mxu0 %v490
        %504 = vmatprep.subr.mxu0 0.0
        %505 = vmatpush1.msra.mxu0 %v491
        %506 = vmatprep.subr.mxu0 0.0
        %507 = vmatpush1.msra.mxu0 0.0
        %508 = vmatprep.subr.mxu0 0.0
        %509 = vmatpush1.msra.mxu0 0.0
        %510 = vmatprep.subr.mxu0 0.0
        %511 = vmatpush1.msra.mxu0 0.0
        %512 = vmatprep.subr.mxu0 0.0
        %513 = vmatpush1.msra.mxu0 0.0
        %514 = vmatprep.subr.mxu0 0.0
        %515 = vmatpush1.msra.mxu0 0.0
        %516 = vmatprep.subr.mxu0 0.0
        %517 = vmatpush1.msra.mxu0 0.0
        %518 = vmatprep.subr.mxu0 0.0
        %519 = vmatpush1.msra.mxu0 0.0
        %520 = vmatprep.subr.mxu0 0.0
        %521 = vmatpush1.msra.mxu0 0.0
        %522 = vmatprep.subr.mxu0 0.0
        %523 = vmatpush1.msra.mxu0 0.0
        %524 = vmatprep.subr.mxu0 0.0
        %525 = vmatpush1.msra.mxu0 0.0
        %526 = vmatprep.subr.mxu0 0.0
        %527 = vmatpush1.msra.mxu0 0.0
        %528 = vmatprep.subr.mxu0 0.0
        %529 = vmatpush1.msra.mxu0 0.0
        %530 = vmatprep.subr.mxu0 0.0
        %531 = vmatpush1.msra.mxu0 0.0
        %532 = vmatprep.subr.mxu0 0.0
        %533 = vmatpush1.msra.mxu0 0.0
        %534 = vmatprep.subr.mxu0 0.0
        %535 = vmatpush1.msra.mxu0 0.0
        %536 = vmatprep.subr.mxu0 0.0
        %537 = vmatpush1.msra.mxu0 0.0
        %538 = vmatprep.subr.mxu0 0.0
        %539 = vmatpush1.msra.mxu0 0.0
        %540 = vmatprep.subr.mxu0 0.0
        %541 = vmatpush1.msra.mxu0 0.0
        %542 = vmatprep.subr.mxu0 0.0
        %543 = vmatpush1.msra.mxu0 0.0
        %544 = vmatprep.subr.mxu0 0.0
        %545 = vmatpush1.msra.mxu0 0.0
        %546 = vmatprep.subr.mxu0 0.0
        %547 = vmatpush1.msra.mxu0 0.0
        %548 = vmatprep.subr.mxu0 0.0
        %549 = vmatpush1.msra.mxu0 0.0
        %550 = vmatprep.subr.mxu0 0.0
        %551 = vmatpush1.msra.mxu0 0.0
        %552 = vmatprep.subr.mxu0 0.0
        %553 = vmatpush1.msra.mxu0 0.0
        %554 = vmatprep.subr.mxu0 0.0
        %555 = vmatpush1.msra.mxu0 0.0
        %556 = vmatprep.subr.mxu0 0.0
        %557 = vmatpush1.msra.mxu0 0.0
        %558 = vmatprep.subr.mxu0 0.0
        %559 = vmatpush1.msra.mxu0 0.0
        %560 = vmatprep.subr.mxu0 0.0
        %561 = vmatpush1.msra.mxu0 0.0
        %562 = vmatprep.mubr.f32.mxu0 0.0
        %563 = vmatmul.mubr.f32.gmra.mrb[0].mxu0 %v493
        %v564 = vpop.f32.mrb[0].mxu0
        %v565 = vadd.f32 0.0, %v564
        %v566 = vpop.f32.mrb[0].mxu0
        %567 = vmatprep.mubr.f32.mxu0 0.0
        %568 = vmatmul.mubr.f32.gmra.mrb[0].mxu0 %v496
        %v569 = vpop.f32.mrb[0].mxu0
        %v570 = vadd.f32 0.0, %v569
        %v571 = vpop.f32.mrb[0].mxu0
        %572 = vdwg.mxu0
        %v573 = vadd.f32 %v486, %v565
        %v574 = vadd.f32 %v487, %v570
        %575 = vst.msk [vmem:[#allocation3] sm:$0xff] %vm376, %v573
        %576 = vst.msk [vmem:[#allocation3 + $0x8] sm:$0xff] %vm376, %v574
        %p577 = scmp.eq.s32.totalorder %s26, 1
        // Predicated region
        $region57: #{t5_layer_ff.1} parent=39 // pred_check
          %p578 = pneg %p577
        $region58: #{t5_layer_ff.1} parent=39 // pred_check_branch
          %580 = sbr.rel (%p578) target = $region60
        $region59: #{t5_layer_ff.1} parent=39 // pred_region
          %v581 = vld [vmem:[#allocation4] sm:$0xff]
          %v582 = vld [vmem:[#allocation4 + $0x8] sm:$0xff]
          %v583 = vld [vmem:[#allocation3] sm:$0xff]
          %v584 = vld [vmem:[#allocation3 + $0x8] sm:$0xff]
          %v585 = vadd.f32 %v581, %v583
          %v586 = vadd.f32 %v582, %v584
          %587 = vst.msk [vmem:[#allocation10] sm:$0xff] %vm376, %v585
          %588 = vst.msk [vmem:[#allocation10 + $0x8] sm:$0xff] %vm376, %v586
        $region60: #{t5_layer_ff.1} parent=39 // pred_fallthru
          _
        // Predicated region
        $region61: #{t5_layer_ff.1} parent=39 // pred_check
          %p589 = pneg %p171
        $region62: #{t5_layer_ff.1} parent=39 // pred_check_branch
          %591 = sbr.rel (%p589) target = $region64
        $region63: #{t5_layer_ff.1} parent=39 // pred_region
          %s592 = smul.u32 2, %s25
          %s594 = ssub.s32 256, 256
          %595 = vsyncadd [#allocation6], %s594
          %s596 = smul.addr %s592, 128
          %s597 = scalar_lea.hbm %s5, %s596
          %s598 = sshll.u32 [#allocation10], 4
          %s599 = int_to_ptr.vmem [resolvable:$true] %s598
          %604 = dma.vmem_to_hbm [thread:$0]  %s599, 256, %s597, [#allocation6], 128, 128, 8
        $region64: #{t5_layer_ff.1} parent=39 // pred_fallthru
          _
        // Predicated region
        $region65: #{t5_layer_ff.1} parent=39 // pred_check
          %p605 = pneg %p171
        $region66: #{t5_layer_ff.1} parent=39 // pred_check_branch
          %607 = sbr.rel (%p605) target = $region68
        $region67: #{t5_layer_ff.1} parent=39 // pred_region
          %608 = dma.done [#allocation6], 256
        $region68: #{t5_layer_ff.1} parent=39 // pred_fallthru
          _
      $region40: #{t5_layer_ff.1} parent=5 // pred_fallthru
        _
      %p609 = scmp.le.s32.totalorder 2, %s16
      // Predicated region
      $region69: #{t5_layer_ff.1} parent=5 // pred_check
        %p610 = pneg %p609
      $region70: #{t5_layer_ff.1} parent=5 // pred_check_branch
        %612 = sbr.rel (%p610) target = $region72
      $region71: #{t5_layer_ff.1} parent=5 // pred_region
        %s613 = ssub.s32 %s16, 2
      $region72: #{t5_layer_ff.1} parent=5 // pred_fallthru
        _
    $region6: #{t5_layer_ff.1} parent=1 // loop_footer
      %s20 = sadd.s32 1, %s16
    $region7: #{t5_layer_ff.1} parent=1 // loop_footer_branch
      %15 = sbr.rel target = $region3
    $region8: #{t5_layer_ff.1} parent=1 // loop_exit
      _
    %614 = vsyncpa [#allocation5], 1
    %s615 = scalar_lea.sflag [#allocation5], 1
    %616 = vsyncpa %s615, 1
    %617 = vsyncpa [#allocation8], 1
    %s618 = scalar_lea.sflag [#allocation8], 1
    %619 = vsyncpa %s618, 1
    %620 = vsyncpa [#allocation6], 1
    %s621 = scalar_lea.sflag [#allocation6], 1
    %622 = vsyncpa %s621, 1

</llo_original>
